<compile_context>
chip_gen: v7x
topology: tpu7x:2x2x1
jax: 0.10.0
libtpu: 0.0.40
codegen_flags: <defaults>
</compile_context>

<pallas_src>
import jax
import jax.numpy as jnp
from jax.experimental import pallas as pl
from jax.experimental.pallas import tpu as pltpu


INPUT_DIM = 128
HIDDEN_DIM = 256
HALF_DIM = HIDDEN_DIM // 2
N_CLASSES = 10
N_EVIDENCE = 8
OUT_WIDTH = 128            # lane-dense slab: [0:10]=consensus, [10]=conf, [11:19]=evidence
MAX_TB = 512               # per-step overhead / DMA granularity is the constraint, not VMEM


def _round_up(n, m):
    return ((n + m - 1) // m) * m


def _choose_tb(b8, max_tb):
    """Largest multiple of 8 <= max_tb that divides b8 (b8 is a multiple of 8).

    Returns (tb, force_pad). force_pad=True only for pathological divisor structure
    (e.g. b8 = 8 * large_prime) where tiny tiles would cost more in per-step overhead
    than one padded copy of x.
    """
    best = 8
    for tb in range(8, min(max_tb, b8) + 1, 8):
        if b8 % tb == 0:
            best = tb
    min_steps = -(-b8 // max_tb)
    if b8 // best > 4 * min_steps:
        return max_tb, True
    return best, False


# --------------------------------------------------------------------------- kernel

def _consensus_kernel(
    x_ref,
    w1_ref, b1_ref,        # feature_extractor.0
    w2_ref, b2_ref,        # feature_extractor.3
    wh1_ref, bh1_ref,      # folded: attention out_proj(V) @ fused head layer 1  (256, 384)
    wh2_ref, bh2_ref,      # fused head layer 2: block-diagonal                  (384, 128)
    out_ref,
):
    bf16 = jnp.bfloat16
    x = x_ref[...].astype(bf16)

    # feature_extractor: Linear -> ReLU -> (Dropout=id) -> Linear -> ReLU -> (Dropout=id)
    h = jnp.dot(x, w1_ref[...], preferred_element_type=jnp.float32) + b1_ref[...]
    h = jnp.maximum(h, 0.0)
    h = jnp.dot(h.astype(bf16), w2_ref[...], preferred_element_type=jnp.float32) + b2_ref[...]
    h = jnp.maximum(h, 0.0)

    # seq_len==1 attention (== out_proj(V)) folded offline into the fused head layer 1.
    hh = jnp.dot(h.astype(bf16), wh1_ref[...], preferred_element_type=jnp.float32) + bh1_ref[...]
    hh = jnp.maximum(hh, 0.0)

    # fused head layer 2: block-diagonal matmul into a lane-dense 128-wide slab.
    z = jnp.dot(hh.astype(bf16), wh2_ref[...], preferred_element_type=jnp.float32) + bh2_ref[...]

    # sigmoid on the confidence + evidence columns [10, 19); identity elsewhere.
    col = jax.lax.broadcasted_iota(jnp.int32, z.shape, dimension=1)
    sig_mask = (col >= N_CLASSES) & (col < N_CLASSES + 1 + N_EVIDENCE)
    out_ref[...] = jnp.where(sig_mask, jax.nn.sigmoid(z), z).astype(out_ref.dtype)


# --------------------------------------------------------------------------- wrapper

def consensus_net_pallas(x, prepped, tb=None, out_dtype=jnp.float32):
    """x: (B, INPUT_DIM) float32 (bf16 also accepted); prepped: output of prep_params()."""
    B = x.shape[0]

    if tb is None:
        if B <= MAX_TB:
            # Single grid step; block == full array, so no batch padding (any B works).
            tb, b_pad = B, B
        else:
            b8 = _round_up(B, 8)
            tb, force_pad = _choose_tb(b8, MAX_TB)
            b_pad = _round_up(b8, tb) if force_pad else b8
    else:
        b_pad = _round_up(B, tb)

    # TODO(synk): for B > MAX_TB with B % 8 != 0 this still copies x once via jnp.pad;
    # an Element-indexed clamped/overlapping last block would avoid it entirely.
    x_p = x if b_pad == B else jnp.pad(x, ((0, b_pad - B), (0, 0)))
    grid = (b_pad // tb,)

    x_spec = pl.BlockSpec((tb, INPUT_DIM), lambda i: (i, 0))
    param_specs = [pl.BlockSpec(p.shape, lambda i: (0, 0)) for p in prepped]
    out_spec = pl.BlockSpec((tb, OUT_WIDTH), lambda i: (i, 0))
    out_shape = jax.ShapeDtypeStruct((b_pad, OUT_WIDTH), out_dtype)

    flops_per_row = 2 * (INPUT_DIM * HIDDEN_DIM + HIDDEN_DIM * HIDDEN_DIM
                         + HIDDEN_DIM * 3 * HALF_DIM + 3 * HALF_DIM * OUT_WIDTH)
    cost = pl.CostEstimate(
        flops=flops_per_row * b_pad,
        transcendentals=b_pad * OUT_WIDTH,
        bytes_accessed=(x_p.size * x_p.dtype.itemsize
                        + sum(int(p.size) * p.dtype.itemsize for p in prepped)
                        + b_pad * OUT_WIDTH * jnp.dtype(out_dtype).itemsize),
    )

    out = pl.pallas_call(
        _consensus_kernel,
        out_shape=out_shape,
        grid_spec=pltpu.PrefetchScalarGridSpec(
            num_scalar_prefetch=0,
            grid=grid,
            in_specs=[x_spec] + param_specs,
            out_specs=out_spec,
        ),
        compiler_params=pltpu.CompilerParams(
            dimension_semantics=("parallel",),
        ),
        cost_estimate=cost,
    )(x_p, *prepped)

    cons = out[:B, :N_CLASSES]
    conf = out[:B, N_CLASSES:N_CLASSES + 1]
    evid = out[:B, N_CLASSES + 1:N_CLASSES + 1 + N_EVIDENCE]
    return cons, conf, evid


# --------------------------------------------------------------------------- params

def _init_linear(key, fan_in, fan_out):
    """PyTorch-Linear-style init; weight stored transposed (in, out), bias (1, out)."""
    kw, kb = jax.random.split(key)
    bound = 1.0 / (fan_in ** 0.5)
    w = jax.random.uniform(kw, (fan_in, fan_out), jnp.float32, -bound, bound)
    b = jax.random.uniform(kb, (1, fan_out), jnp.float32, -bound, bound)
    return w, b


def make_params(key):
    keys = jax.random.split(key, 10)
    w1, b1 = _init_linear(keys[0], INPUT_DIM, HIDDEN_DIM)      # feature_extractor.0
    w2, b2 = _init_linear(keys[1], HIDDEN_DIM, HIDDEN_DIM)     # feature_extractor.3
    wv, bv = _init_linear(keys[2], HIDDEN_DIM, HIDDEN_DIM)     # attention V in_proj slice
    wo, bo = _init_linear(keys[3], HIDDEN_DIM, HIDDEN_DIM)     # attention out_proj
    wc1, bc1 = _init_linear(keys[4], HIDDEN_DIM, HALF_DIM)     # consensus_head.0
    wc2, bc2 = _init_linear(keys[5], HALF_DIM, N_CLASSES)      # consensus_head.2
    wf1, bf1 = _init_linear(keys[6], HIDDEN_DIM, HALF_DIM)     # confidence_head.0
    wf2, bf2 = _init_linear(keys[7], HALF_DIM, 1)              # confidence_head.2
    we1, be1 = _init_linear(keys[8], HIDDEN_DIM, HALF_DIM)     # evidence_head.0
    we2, be2 = _init_linear(keys[9], HALF_DIM, N_EVIDENCE)     # evidence_head.2
    return [w1, b1, w2, b2, wv, bv, wo, bo,
            wc1, bc1, wc2, bc2, wf1, bf1, wf2, bf2, we1, be1, we2, be2]


def prep_params(params):
    """Fold attention V/out projections into the fused head layer 1; cast weights to bf16."""
    (w1, b1, w2, b2, wv, bv, wo, bo,
     wc1, bc1, wc2, bc2, wf1, bf1, wf2, bf2, we1, be1, we2, be2) = params

    # seq_len==1 attention: out_proj(V) == h @ (wv @ wo) + (bv @ wo + bo)  (exact).
    w_vo = wv @ wo
    b_vo = bv @ wo + bo

    # Fused head layer 1 (256, 384) = [wc1 | wf1 | we1], then fold the attention matmul
    # into it (no nonlinearity in between -> exact in f32).
    wh1_cat = jnp.concatenate([wc1, wf1, we1], axis=1)
    bh1_cat = jnp.concatenate([bc1, bf1, be1], axis=1)
    wh1 = w_vo @ wh1_cat                      # (256, 384)
    bh1 = b_vo @ wh1_cat + bh1_cat            # (1, 384)

    # Fused head layer 2: block-diagonal, padded to a lane-dense 128-wide output.
    wh2 = jnp.zeros((3 * HALF_DIM, OUT_WIDTH), jnp.float32)
    wh2 = wh2.at[0:HALF_DIM, 0:N_CLASSES].set(wc2)
    wh2 = wh2.at[HALF_DIM:2 * HALF_DIM, N_CLASSES:N_CLASSES + 1].set(wf2)
    wh2 = wh2.at[2 * HALF_DIM:3 * HALF_DIM,
                 N_CLASSES + 1:N_CLASSES + 1 + N_EVIDENCE].set(we2)
    bh2 = jnp.zeros((1, OUT_WIDTH), jnp.float32)
    bh2 = bh2.at[:, 0:N_CLASSES].set(bc2[0])
    bh2 = bh2.at[:, N_CLASSES:N_CLASSES + 1].set(bf2[0])
    bh2 = bh2.at[:, N_CLASSES + 1:N_CLASSES + 1 + N_EVIDENCE].set(be2[0])

    bf16 = jnp.bfloat16
    return [w1.astype(bf16), b1, w2.astype(bf16), b2,
            wh1.astype(bf16), bh1, wh2.astype(bf16), bh2]


# --------------------------------------------------------------------------- references

def consensus_net_ref_bf16(x, prepped):
    """Pure-JAX reference with the same folded/fused params and bf16 matmul operands."""
    w1, b1, w2, b2, wh1, bh1, wh2, bh2 = prepped
    bf16 = jnp.bfloat16
    dot = lambda a, w: jnp.dot(a.astype(bf16), w, preferred_element_type=jnp.float32)
    h = jnp.maximum(dot(x, w1) + b1, 0.0)
    h = jnp.maximum(dot(h, w2) + b2, 0.0)
    hh = jnp.maximum(dot(h, wh1) + bh1, 0.0)
    z = dot(hh, wh2) + bh2
    cons = z[:, :N_CLASSES]
    conf = jax.nn.sigmoid(z[:, N_CLASSES:N_CLASSES + 1])
    evid = jax.nn.sigmoid(z[:, N_CLASSES + 1:N_CLASSES + 1 + N_EVIDENCE])
    return cons, conf, evid


def consensus_net_ref_f32(x, params):
    """Exact f32, un-fused reference of the original forward (loose check for bf16 path)."""
    (w1, b1, w2, b2, wv, bv, wo, bo,
     wc1, bc1, wc2, bc2, wf1, bf1, wf2, bf2, we1, be1, we2, be2) = params
    h = jnp.maximum(x @ w1 + b1, 0.0)
    h = jnp.maximum(h @ w2 + b2, 0.0)
    f = (h @ wv + bv) @ wo + bo                       # seq_len == 1 attention
    cons = jnp.maximum(f @ wc1 + bc1, 0.0) @ wc2 + bc2
    conf = jax.nn.sigmoid(jnp.maximum(f @ wf1 + bf1, 0.0) @ wf2 + bf2)
    evid = jax.nn.sigmoid(jnp.maximum(f @ we1 + be1, 0.0) @ we2 + be2)
    return cons, conf, evid


if __name__ == "__main__":
    key = jax.random.PRNGKey(0)
    kx, kp, kx2, kx3 = jax.random.split(key, 4)

    params = make_params(kp)
    prepped = prep_params(params)

    # ---- primary small-shape test (single grid step, block == full array) ----
    B = 16
    x = jax.random.normal(kx, (B, INPUT_DIM), dtype=jnp.float32)
    cons, conf, evid = jax.block_until_ready(consensus_net_pallas(x, prepped))

    assert cons.shape == (B, N_CLASSES)
    assert conf.shape == (B, 1)
    assert evid.shape == (B, N_EVIDENCE)

    # Tight check against a reference doing the same bf16-operand / f32-accumulate math.
    cons_r, conf_r, evid_r = consensus_net_ref_bf16(x, prepped)
    assert jnp.allclose(cons, cons_r, atol=1e-3, rtol=1e-3)
    assert jnp.allclose(conf, conf_r, atol=1e-3, rtol=1e-3)
    assert jnp.allclose(evid, evid_r, atol=1e-3, rtol=1e-3)

    # Loose check against the exact f32 un-fused forward (bf16 matmul rounding only).
    cons_e, conf_e, evid_e = consensus_net_ref_f32(x, params)
    assert jnp.allclose(cons, cons_e, atol=1e-1, rtol=1e-1)
    assert jnp.allclose(conf, conf_e, atol=5e-2, rtol=1e-1)
    assert jnp.allclose(evid, evid_e, atol=5e-2, rtol=1e-1)

    # ---- non-multiple-of-8 batch: no padding, block == full array ----
    B2 = 12
    x2 = jax.random.normal(kx2, (B2, INPUT_DIM), dtype=jnp.float32)
    c2, f2, e2 = jax.block_until_ready(consensus_net_pallas(x2, prepped))
    c2r, f2r, e2r = consensus_net_ref_bf16(x2, prepped)
    assert c2.shape == (B2, N_CLASSES) and f2.shape == (B2, 1) and e2.shape == (B2, N_EVIDENCE)
    assert jnp.allclose(c2, c2r, atol=1e-3, rtol=1e-3)
    assert jnp.allclose(f2, f2r, atol=1e-3, rtol=1e-3)
    assert jnp.allclose(e2, e2r, atol=1e-3, rtol=1e-3)

    # ---- multi-step grid path (B > MAX_TB, tile divides B -> no pad copy) ----
    B3 = 1024
    x3 = jax.random.normal(kx3, (B3, INPUT_DIM), dtype=jnp.float32)
    c3, f3, e3 = jax.block_until_ready(consensus_net_pallas(x3, prepped))
    c3r, f3r, e3r = consensus_net_ref_bf16(x3, prepped)
    assert jnp.allclose(c3, c3r, atol=1e-3, rtol=1e-3)
    assert jnp.allclose(f3, f3r, atol=1e-3, rtol=1e-3)
    assert jnp.allclose(e3, e3r, atol=1e-3, rtol=1e-3)

    # ---- bf16-output variant (halved HBM writeback on mem-bound v6e/v7x) ----
    cb, fb, eb = jax.block_until_ready(
        consensus_net_pallas(x, prepped, out_dtype=jnp.bfloat16))
    assert cb.dtype == jnp.bfloat16
    assert jnp.allclose(cb.astype(jnp.float32), cons_r, atol=5e-2, rtol=2e-2)
    assert jnp.allclose(fb.astype(jnp.float32), conf_r, atol=2e-2, rtol=2e-2)
    assert jnp.allclose(eb.astype(jnp.float32), evid_r, atol=2e-2, rtol=2e-2)

    print("KERNEL_OK")
</pallas_src>

<mosaic_0001>
module attributes {stable_mosaic.version = 11 : i64} {
  func.func @_consensus_kernel(%arg0: i32, %arg1: memref<16x128xf32, #tpu.memory_space<vmem>>, %arg2: memref<128x256xbf16, #tpu.memory_space<vmem>>, %arg3: memref<1x256xf32, #tpu.memory_space<vmem>>, %arg4: memref<256x256xbf16, #tpu.memory_space<vmem>>, %arg5: memref<1x256xf32, #tpu.memory_space<vmem>>, %arg6: memref<256x384xbf16, #tpu.memory_space<vmem>>, %arg7: memref<1x384xf32, #tpu.memory_space<vmem>>, %arg8: memref<384x128xbf16, #tpu.memory_space<vmem>>, %arg9: memref<1x128xf32, #tpu.memory_space<vmem>>, %arg10: memref<16x128xf32, #tpu.memory_space<vmem>>) attributes {dimension_semantics = [#tpu.dimension_semantics<parallel>], iteration_bounds = array<i64: 1>, scalar_prefetch = 0 : i64, scratch_operands = 0 : i64, tpu.core_type = #tpu.core_type<tc>, window_params = [{transform_indices = @transform_0, window_bounds = array<i64: 16, 128>}, {pipeline_mode = #tpu.pipeline_mode<synchronous>, transform_indices = @transform_1, window_bounds = array<i64: 128, 256>}, {pipeline_mode = #tpu.pipeline_mode<synchronous>, transform_indices = @transform_2, window_bounds = array<i64: 1, 256>}, {pipeline_mode = #tpu.pipeline_mode<synchronous>, transform_indices = @transform_3, window_bounds = array<i64: 256, 256>}, {pipeline_mode = #tpu.pipeline_mode<synchronous>, transform_indices = @transform_4, window_bounds = array<i64: 1, 256>}, {pipeline_mode = #tpu.pipeline_mode<synchronous>, transform_indices = @transform_5, window_bounds = array<i64: 256, 384>}, {pipeline_mode = #tpu.pipeline_mode<synchronous>, transform_indices = @transform_6, window_bounds = array<i64: 1, 384>}, {pipeline_mode = #tpu.pipeline_mode<synchronous>, transform_indices = @transform_7, window_bounds = array<i64: 384, 128>}, {pipeline_mode = #tpu.pipeline_mode<synchronous>, transform_indices = @transform_8, window_bounds = array<i64: 1, 128>}, {transform_indices = @transform_9, window_bounds = array<i64: 16, 128>}]} {
    %c0 = arith.constant 0 : index
    %c0_0 = arith.constant 0 : index
    %0 = vector.load %arg1[%c0, %c0_0] : memref<16x128xf32, #tpu.memory_space<vmem>>, vector<16x128xf32>
    %1 = arith.truncf %0 : vector<16x128xf32> to vector<16x128xbf16>
    %c0_1 = arith.constant 0 : index
    %c0_2 = arith.constant 0 : index
    %2 = vector.load %arg2[%c0_1, %c0_2] : memref<128x256xbf16, #tpu.memory_space<vmem>>, vector<128x256xbf16>
    %cst = arith.constant dense<0.000000e+00> : vector<16x256xf32>
    %3 = tpu.matmul %1, %2, %cst {dimension_numbers = #tpu.dot_dimension_numbers<[1], [0], [0], [1], [0, 0, 1, 1], [], []>} : vector<16x128xbf16>, vector<128x256xbf16>, vector<16x256xf32> -> vector<16x256xf32>
    %c0_3 = arith.constant 0 : index
    %c0_4 = arith.constant 0 : index
    %4 = vector.load %arg3[%c0_3, %c0_4] : memref<1x256xf32, #tpu.memory_space<vmem>>, vector<1x256xf32>
    %5 = vector.broadcast %4 : vector<1x256xf32> to vector<16x256xf32>
    %6 = arith.addf %3, %5 : vector<16x256xf32>
    %cst_5 = arith.constant 0.000000e+00 : f32
    %7 = vector.broadcast %cst_5 : f32 to vector<16x256xf32>
    %8 = arith.maximumf %6, %7 : vector<16x256xf32>
    %9 = arith.truncf %8 : vector<16x256xf32> to vector<16x256xbf16>
    %c0_6 = arith.constant 0 : index
    %c0_7 = arith.constant 0 : index
    %10 = vector.load %arg4[%c0_6, %c0_7] : memref<256x256xbf16, #tpu.memory_space<vmem>>, vector<256x256xbf16>
    %cst_8 = arith.constant dense<0.000000e+00> : vector<16x256xf32>
    %11 = tpu.matmul %9, %10, %cst_8 {dimension_numbers = #tpu.dot_dimension_numbers<[1], [0], [0], [1], [0, 0, 1, 1], [], []>} : vector<16x256xbf16>, vector<256x256xbf16>, vector<16x256xf32> -> vector<16x256xf32>
    %c0_9 = arith.constant 0 : index
    %c0_10 = arith.constant 0 : index
    %12 = vector.load %arg5[%c0_9, %c0_10] : memref<1x256xf32, #tpu.memory_space<vmem>>, vector<1x256xf32>
    %13 = vector.broadcast %12 : vector<1x256xf32> to vector<16x256xf32>
    %14 = arith.addf %11, %13 : vector<16x256xf32>
    %cst_11 = arith.constant 0.000000e+00 : f32
    %15 = vector.broadcast %cst_11 : f32 to vector<16x256xf32>
    %16 = arith.maximumf %14, %15 : vector<16x256xf32>
    %17 = arith.truncf %16 : vector<16x256xf32> to vector<16x256xbf16>
    %c0_12 = arith.constant 0 : index
    %c0_13 = arith.constant 0 : index
    %18 = vector.load %arg6[%c0_12, %c0_13] : memref<256x384xbf16, #tpu.memory_space<vmem>>, vector<256x384xbf16>
    %cst_14 = arith.constant dense<0.000000e+00> : vector<16x384xf32>
    %19 = tpu.matmul %17, %18, %cst_14 {dimension_numbers = #tpu.dot_dimension_numbers<[1], [0], [0], [1], [0, 0, 1, 1], [], []>} : vector<16x256xbf16>, vector<256x384xbf16>, vector<16x384xf32> -> vector<16x384xf32>
    %c0_15 = arith.constant 0 : index
    %c0_16 = arith.constant 0 : index
    %20 = vector.load %arg7[%c0_15, %c0_16] : memref<1x384xf32, #tpu.memory_space<vmem>>, vector<1x384xf32>
    %21 = vector.broadcast %20 : vector<1x384xf32> to vector<16x384xf32>
    %22 = arith.addf %19, %21 : vector<16x384xf32>
    %cst_17 = arith.constant 0.000000e+00 : f32
    %23 = vector.broadcast %cst_17 : f32 to vector<16x384xf32>
    %24 = arith.maximumf %22, %23 : vector<16x384xf32>
    %25 = arith.truncf %24 : vector<16x384xf32> to vector<16x384xbf16>
    %c0_18 = arith.constant 0 : index
    %c0_19 = arith.constant 0 : index
    %26 = vector.load %arg8[%c0_18, %c0_19] : memref<384x128xbf16, #tpu.memory_space<vmem>>, vector<384x128xbf16>
    %cst_20 = arith.constant dense<0.000000e+00> : vector<16x128xf32>
    %27 = tpu.matmul %25, %26, %cst_20 {dimension_numbers = #tpu.dot_dimension_numbers<[1], [0], [0], [1], [0, 0, 1, 1], [], []>} : vector<16x384xbf16>, vector<384x128xbf16>, vector<16x128xf32> -> vector<16x128xf32>
    %c0_21 = arith.constant 0 : index
    %c0_22 = arith.constant 0 : index
    %28 = vector.load %arg9[%c0_21, %c0_22] : memref<1x128xf32, #tpu.memory_space<vmem>>, vector<1x128xf32>
    %29 = vector.broadcast %28 : vector<1x128xf32> to vector<16x128xf32>
    %30 = arith.addf %27, %29 : vector<16x128xf32>
    %31 = tpu.iota {dimensions = array<i32: 1>} : vector<16x128xi32>
    %c10_i32 = arith.constant 10 : i32
    %32 = vector.broadcast %c10_i32 : i32 to vector<16x128xi32>
    %33 = arith.cmpi sge, %31, %32 : vector<16x128xi32>
    %c19_i32 = arith.constant 19 : i32
    %34 = vector.broadcast %c19_i32 : i32 to vector<16x128xi32>
    %35 = arith.cmpi slt, %31, %34 : vector<16x128xi32>
    %36 = arith.andi %33, %35 : vector<16x128xi1>
    %37 = arith.negf %30 : vector<16x128xf32>
    %38 = math.exp %37 : vector<16x128xf32>
    %cst_23 = arith.constant 1.000000e+00 : f32
    %39 = vector.broadcast %cst_23 : f32 to vector<16x128xf32>
    %40 = arith.addf %39, %38 : vector<16x128xf32>
    %41 = arith.divf %39, %40 : vector<16x128xf32>
    %42 = arith.select %36, %41, %30 : vector<16x128xi1>, vector<16x128xf32>
    %c0_24 = arith.constant 0 : index
    %c0_25 = arith.constant 0 : index
    %43 = vector.load %arg10[%c0_24, %c0_25] : memref<16x128xf32, #tpu.memory_space<vmem>>, vector<16x128xf32>
    tpu.vector_store %arg10[%c0_24, %c0_25], %42 {strides = array<i32>} : memref<16x128xf32, #tpu.memory_space<vmem>>, vector<16x128xf32>,
    return
  }
  func.func @transform_0(%arg0: i32) -> (i32, i32) {
    %c0_i32 = arith.constant 0 : i32
    %c0_i32_0 = arith.constant 0 : i32
    return %arg0, %c0_i32 : i32, i32
  }
  func.func @transform_1(%arg0: i32) -> (i32, i32) {
    %c0_i32 = arith.constant 0 : i32
    %c0_i32_0 = arith.constant 0 : i32
    %c0_i32_1 = arith.constant 0 : i32
    return %c0_i32, %c0_i32_0 : i32, i32
  }
  func.func @transform_2(%arg0: i32) -> (i32, i32) {
    %c0_i32 = arith.constant 0 : i32
    %c0_i32_0 = arith.constant 0 : i32
    %c0_i32_1 = arith.constant 0 : i32
    return %c0_i32, %c0_i32_0 : i32, i32
  }
  func.func @transform_3(%arg0: i32) -> (i32, i32) {
    %c0_i32 = arith.constant 0 : i32
    %c0_i32_0 = arith.constant 0 : i32
    %c0_i32_1 = arith.constant 0 : i32
    return %c0_i32, %c0_i32_0 : i32, i32
  }
  func.func @transform_4(%arg0: i32) -> (i32, i32) {
    %c0_i32 = arith.constant 0 : i32
    %c0_i32_0 = arith.constant 0 : i32
    %c0_i32_1 = arith.constant 0 : i32
    return %c0_i32, %c0_i32_0 : i32, i32
  }
  func.func @transform_5(%arg0: i32) -> (i32, i32) {
    %c0_i32 = arith.constant 0 : i32
    %c0_i32_0 = arith.constant 0 : i32
    %c0_i32_1 = arith.constant 0 : i32
    return %c0_i32, %c0_i32_0 : i32, i32
  }
  func.func @transform_6(%arg0: i32) -> (i32, i32) {
    %c0_i32 = arith.constant 0 : i32
    %c0_i32_0 = arith.constant 0 : i32
    %c0_i32_1 = arith.constant 0 : i32
    return %c0_i32, %c0_i32_0 : i32, i32
  }
  func.func @transform_7(%arg0: i32) -> (i32, i32) {
    %c0_i32 = arith.constant 0 : i32
    %c0_i32_0 = arith.constant 0 : i32
    %c0_i32_1 = arith.constant 0 : i32
    return %c0_i32, %c0_i32_0 : i32, i32
  }
  func.func @transform_8(%arg0: i32) -> (i32, i32) {
    %c0_i32 = arith.constant 0 : i32
    %c0_i32_0 = arith.constant 0 : i32
    %c0_i32_1 = arith.constant 0 : i32
    return %c0_i32, %c0_i32_0 : i32, i32
  }
  func.func @transform_9(%arg0: i32) -> (i32, i32) {
    %c0_i32 = arith.constant 0 : i32
    %c0_i32_0 = arith.constant 0 : i32
    return %arg0, %c0_i32 : i32, i32
  }
}

</mosaic_0001>

<llo_original>
// kernel: tpu_custom_call.1
$region0: #{tpu_custom_call.1}
  #allocation0 [shape = 'u32[]', space=smem, size = 0x4, offset = 0x4, fixed_abs, tag = 'smem constant byte address 0x4 - core index']
  #allocation1 [shape = 'u32[144,128]{1,0:T(1,128)}', space=vmem, size = 0x12000, scoped, tag = 'internal scratch']
  %s0 = inlined_call_operand.hbm [shape: f32[16,128], index: 0, kind: input, shape index: {}]
  %s1 = inlined_call_operand.hbm [shape: bf16[128,256], index: 1, kind: input, shape index: {}]
  %s2 = inlined_call_operand.vmem [shape: f32[1,256], index: 2, kind: input, shape index: {}]
  %s3 = inlined_call_operand.hbm [shape: bf16[256,256], index: 3, kind: input, shape index: {}]
  %s4 = inlined_call_operand.vmem [shape: f32[1,256], index: 4, kind: input, shape index: {}]
  %s5 = inlined_call_operand.hbm [shape: bf16[256,384], index: 5, kind: input, shape index: {}]
  %s6 = inlined_call_operand.vmem [shape: f32[1,384], index: 6, kind: input, shape index: {}]
  %s7 = inlined_call_operand.hbm [shape: bf16[384,128], index: 7, kind: input, shape index: {}]
  %s8 = inlined_call_operand.vmem [shape: f32[1,128], index: 8, kind: input, shape index: {}]
  %s9 = inlined_call_operand.hbm [shape: f32[16,128], index: 9, kind: output, shape index: {}]
  %s10 = sld [smem:[#allocation0]]
  $region66: #{tpu_custom_call.1} parent=0
    _
  %s12 = ssub.s32 1, %s10
  %s13 = scalar_select 0, %s12, %s10
  $region1: #{tpu_custom_call.1} parent=0
    #allocation2 [shape = 'u8[8192]{0}', space=vmem, size = 0x2000, scoped, tag = 'input window, operand 0, single buffered']
    #allocation3 [shape = 's32[1]{0}', space=sflag, size = 0x4, scoped, tag = 'scoped memory for tpu_custom_call.1']
    #allocation4 [shape = 's32[1]{0}', space=sflag, size = 0x4, scoped, tag = 'scoped memory for tpu_custom_call.1']
    #allocation5 [shape = 'u8[65536]{0}', space=vmem, size = 0x10000, scoped, tag = 'input window, operand 1, single buffered']
    #allocation6 [shape = 's32[1]{0}', space=sflag, size = 0x4, scoped, tag = 'scoped memory for tpu_custom_call.1']
    #allocation7 [shape = 'u8[131072]{0}', space=vmem, size = 0x20000, scoped, tag = 'input window, operand 3, single buffered']
    #allocation8 [shape = 'u8[196608]{0}', space=vmem, size = 0x30000, scoped, tag = 'input window, operand 5, single buffered']
    #allocation9 [shape = 's32[1]{0}', space=sflag, size = 0x4, scoped, tag = 'scoped memory for tpu_custom_call.1']
    #allocation10 [shape = 'u8[98304]{0}', space=vmem, size = 0x18000, scoped, tag = 'input window, operand 7, single buffered']
    #allocation11 [shape = 'u8[8192]{0}', space=vmem, size = 0x2000, scoped, tag = 'output window, operand 0, single buffered']
    %14 = vsyncpa [#allocation3], 0
    %15 = vsyncpa [#allocation6], 0
    %16 = vsyncpa [#allocation9], 0
    %17 = vsyncpa [#allocation4], 0
    // Predicated region
    $region2: #{tpu_custom_call.1} parent=1 // pred_check
      _
    $region3: #{tpu_custom_call.1} parent=1 // pred_check_branch
      %19 = sbr.rel (0) target = $region5
    $region4: #{tpu_custom_call.1} parent=1 // pred_region
      %s21 = ssub.s32 256, 256
      %22 = vsyncadd [#allocation3], %s21
      %s23 = sshll.u32 [#allocation2], 4
      %s24 = int_to_ptr.vmem [resolvable:$true] %s23
      %29 = dma.hbm_to_vmem [thread:$0]  %s0, 256, %s24, [#allocation3], 128, 128, 8
    $region5: #{tpu_custom_call.1} parent=1 // pred_fallthru
      _
    // Predicated region
    $region6: #{tpu_custom_call.1} parent=1 // pred_check
      _
    $region7: #{tpu_custom_call.1} parent=1 // pred_check_branch
      %31 = sbr.rel (0) target = $region9
    $region8: #{tpu_custom_call.1} parent=1 // pred_region
      %s33 = ssub.s32 2048, 2048
      %34 = vsyncadd [#allocation6], %s33
      %s35 = sshll.u32 [#allocation5], 4
      %s36 = int_to_ptr.vmem [resolvable:$true] %s35
      %41 = dma.hbm_to_vmem [thread:$0]  %s1, 2048, %s36, [#allocation6], 128, 128, 8
    $region9: #{tpu_custom_call.1} parent=1 // pred_fallthru
      _
    // Predicated region
    $region10: #{tpu_custom_call.1} parent=1 // pred_check
      _
    $region11: #{tpu_custom_call.1} parent=1 // pred_check_branch
      %43 = sbr.rel (0) target = $region13
    $region12: #{tpu_custom_call.1} parent=1 // pred_region
      _
    $region13: #{tpu_custom_call.1} parent=1 // pred_fallthru
      _
    // Predicated region
    $region14: #{tpu_custom_call.1} parent=1 // pred_check
      _
    $region15: #{tpu_custom_call.1} parent=1 // pred_check_branch
      %45 = sbr.rel (0) target = $region17
    $region16: #{tpu_custom_call.1} parent=1 // pred_region
      %s47 = ssub.s32 4096, 4096
      %48 = vsyncadd [#allocation6], %s47
      %s49 = sshll.u32 [#allocation7], 4
      %s50 = int_to_ptr.vmem [resolvable:$true] %s49
      %55 = dma.hbm_to_vmem [thread:$0]  %s3, 4096, %s50, [#allocation6], 128, 128, 8
    $region17: #{tpu_custom_call.1} parent=1 // pred_fallthru
      _
    // Predicated region
    $region18: #{tpu_custom_call.1} parent=1 // pred_check
      _
    $region19: #{tpu_custom_call.1} parent=1 // pred_check_branch
      %57 = sbr.rel (0) target = $region21
    $region20: #{tpu_custom_call.1} parent=1 // pred_region
      _
    $region21: #{tpu_custom_call.1} parent=1 // pred_fallthru
      _
    // Predicated region
    $region22: #{tpu_custom_call.1} parent=1 // pred_check
      _
    $region23: #{tpu_custom_call.1} parent=1 // pred_check_branch
      %59 = sbr.rel (0) target = $region25
    $region24: #{tpu_custom_call.1} parent=1 // pred_region
      %s61 = ssub.s32 6144, 6144
      %62 = vsyncadd [#allocation9], %s61
      %s63 = sshll.u32 [#allocation8], 4
      %s64 = int_to_ptr.vmem [resolvable:$true] %s63
      %69 = dma.hbm_to_vmem [thread:$0]  %s5, 6144, %s64, [#allocation9], 192, 192, 12
    $region25: #{tpu_custom_call.1} parent=1 // pred_fallthru
      _
    // Predicated region
    $region26: #{tpu_custom_call.1} parent=1 // pred_check
      _
    $region27: #{tpu_custom_call.1} parent=1 // pred_check_branch
      %71 = sbr.rel (0) target = $region29
    $region28: #{tpu_custom_call.1} parent=1 // pred_region
      _
    $region29: #{tpu_custom_call.1} parent=1 // pred_fallthru
      _
    // Predicated region
    $region30: #{tpu_custom_call.1} parent=1 // pred_check
      _
    $region31: #{tpu_custom_call.1} parent=1 // pred_check_branch
      %73 = sbr.rel (0) target = $region33
    $region32: #{tpu_custom_call.1} parent=1 // pred_region
      %s75 = ssub.s32 3072, 3072
      %76 = vsyncadd [#allocation9], %s75
      %s77 = sshll.u32 [#allocation10], 4
      %s78 = int_to_ptr.vmem [resolvable:$true] %s77
      %83 = dma.hbm_to_vmem [thread:$0]  %s7, 3072, %s78, [#allocation9], 64, 64, 4
    $region33: #{tpu_custom_call.1} parent=1 // pred_fallthru
      _
    // Predicated region
    $region34: #{tpu_custom_call.1} parent=1 // pred_check
      _
    $region35: #{tpu_custom_call.1} parent=1 // pred_check_branch
      %85 = sbr.rel (0) target = $region37
    $region36: #{tpu_custom_call.1} parent=1 // pred_region
      _
    $region37: #{tpu_custom_call.1} parent=1 // pred_fallthru
      _
    // Predicated region
    $region38: #{tpu_custom_call.1} parent=1 // pred_check
      _
    $region39: #{tpu_custom_call.1} parent=1 // pred_check_branch
      %87 = sbr.rel (0) target = $region41
    $region40: #{tpu_custom_call.1} parent=1 // pred_region
      %88 = dma.done [#allocation3], 256
    $region41: #{tpu_custom_call.1} parent=1 // pred_fallthru
      _
    // Predicated region
    $region42: #{tpu_custom_call.1} parent=1 // pred_check
      _
    $region43: #{tpu_custom_call.1} parent=1 // pred_check_branch
      %90 = sbr.rel (0) target = $region45
    $region44: #{tpu_custom_call.1} parent=1 // pred_region
      %91 = dma.done [#allocation6], 2048
    $region45: #{tpu_custom_call.1} parent=1 // pred_fallthru
      _
    // Predicated region
    $region46: #{tpu_custom_call.1} parent=1 // pred_check
      _
    $region47: #{tpu_custom_call.1} parent=1 // pred_check_branch
      %93 = sbr.rel (0) target = $region49
    $region48: #{tpu_custom_call.1} parent=1 // pred_region
      %94 = dma.done [#allocation6], 4096
    $region49: #{tpu_custom_call.1} parent=1 // pred_fallthru
      _
    // Predicated region
    $region50: #{tpu_custom_call.1} parent=1 // pred_check
      _
    $region51: #{tpu_custom_call.1} parent=1 // pred_check_branch
      %96 = sbr.rel (0) target = $region53
    $region52: #{tpu_custom_call.1} parent=1 // pred_region
      %97 = dma.done [#allocation9], 6144
    $region53: #{tpu_custom_call.1} parent=1 // pred_fallthru
      _
    // Predicated region
    $region54: #{tpu_custom_call.1} parent=1 // pred_check
      _
    $region55: #{tpu_custom_call.1} parent=1 // pred_check_branch
      %99 = sbr.rel (0) target = $region57
    $region56: #{tpu_custom_call.1} parent=1 // pred_region
      %100 = dma.done [#allocation9], 3072
    $region57: #{tpu_custom_call.1} parent=1 // pred_fallthru
      _
    %v102 = vld [vmem:[#allocation2] sm:$0xff]
    %v103 = vld [vmem:[#allocation2 + $0x8] sm:$0xff]
    %v104 = vpack.c.bf16 %v103, %v102
    %v105 = vld [vmem:[#allocation5] sm:$0xff]
    %v106 = vld [vmem:[#allocation5 + $0x8] sm:$0xff]
    %v107 = vld [vmem:[#allocation5 + $0x10] sm:$0xff]
    %v108 = vld [vmem:[#allocation5 + $0x18] sm:$0xff]
    %v109 = vld [vmem:[#allocation5 + $0x20] sm:$0xff]
    %v110 = vld [vmem:[#allocation5 + $0x28] sm:$0xff]
    %v111 = vld [vmem:[#allocation5 + $0x30] sm:$0xff]
    %v112 = vld [vmem:[#allocation5 + $0x38] sm:$0xff]
    %v113 = vld [vmem:[#allocation5 + $0x40] sm:$0xff]
    %v114 = vld [vmem:[#allocation5 + $0x48] sm:$0xff]
    %v115 = vld [vmem:[#allocation5 + $0x50] sm:$0xff]
    %v116 = vld [vmem:[#allocation5 + $0x58] sm:$0xff]
    %v117 = vld [vmem:[#allocation5 + $0x60] sm:$0xff]
    %v118 = vld [vmem:[#allocation5 + $0x68] sm:$0xff]
    %v119 = vld [vmem:[#allocation5 + $0x70] sm:$0xff]
    %v120 = vld [vmem:[#allocation5 + $0x78] sm:$0xff]
    %v121 = vld [vmem:[%s2] sm:$0x3]
    %v123 = vlaneseq
    %v124 = vshrl.u32 %v123, 7
    %v125 = vsub.s32 0, %v124
    %v126 = vrot.slane %v121, %v125
    %v127 = vlaneseq
    %v128 = vshrl.u32 %v127, 7
    %v129 = vsub.s32 1, %v128
    %v130 = vrot.slane %v121, %v129
    %v149 = vunpack.c.l.b16 %v105
    %v150 = vunpack.c.h.b16 %v105
    %v151 = vunpack.c.l.b16 %v106
    %v152 = vunpack.c.h.b16 %v106
    %v153 = vunpack.c.l.b16 %v107
    %v154 = vunpack.c.h.b16 %v107
    %v155 = vunpack.c.l.b16 %v108
    %v156 = vunpack.c.h.b16 %v108
    %v157 = vunpack.c.l.b16 %v109
    %v158 = vunpack.c.h.b16 %v109
    %v159 = vunpack.c.l.b16 %v110
    %v160 = vunpack.c.h.b16 %v110
    %v161 = vunpack.c.l.b16 %v111
    %v162 = vunpack.c.h.b16 %v111
    %v163 = vunpack.c.l.b16 %v112
    %v164 = vunpack.c.h.b16 %v112
    %v165 = vunpack.c.l.b16 %v113
    %v166 = vunpack.c.h.b16 %v113
    %v167 = vunpack.c.l.b16 %v114
    %v168 = vunpack.c.h.b16 %v114
    %v169 = vunpack.c.l.b16 %v115
    %v170 = vunpack.c.h.b16 %v115
    %v171 = vunpack.c.l.b16 %v116
    %v172 = vunpack.c.h.b16 %v116
    %v173 = vunpack.c.l.b16 %v117
    %v174 = vunpack.c.h.b16 %v117
    %v175 = vunpack.c.l.b16 %v118
    %v176 = vunpack.c.h.b16 %v118
    %v177 = vunpack.c.l.b16 %v119
    %v178 = vunpack.c.h.b16 %v119
    %v179 = vunpack.c.l.b16 %v120
    %v180 = vunpack.c.h.b16 %v120
    %v181 = vpack.c.b16 %v151, %v149
    %v182 = vpack.c.b16 %v152, %v150
    %v183 = vpack.c.b16 %v155, %v153
    %v184 = vpack.c.b16 %v156, %v154
    %v185 = vpack.c.b16 %v159, %v157
    %v186 = vpack.c.b16 %v160, %v158
    %v187 = vpack.c.b16 %v163, %v161
    %v188 = vpack.c.b16 %v164, %v162
    %v189 = vpack.c.b16 %v167, %v165
    %v190 = vpack.c.b16 %v168, %v166
    %v191 = vpack.c.b16 %v171, %v169
    %v192 = vpack.c.b16 %v172, %v170
    %v193 = vpack.c.b16 %v175, %v173
    %v194 = vpack.c.b16 %v176, %v174
    %v195 = vpack.c.b16 %v179, %v177
    %v196 = vpack.c.b16 %v180, %v178
    %213 = vmatprep.subr.bf16.mxu0 %v182
    %214 = vmatpush1.bf16.msra.mxu0 %v181
    %215 = vmatprep.subr.bf16.mxu0 %v184
    %216 = vmatpush1.bf16.msra.mxu0 %v183
    %217 = vmatprep.subr.bf16.mxu0 %v186
    %218 = vmatpush1.bf16.msra.mxu0 %v185
    %219 = vmatprep.subr.bf16.mxu0 %v188
    %220 = vmatpush1.bf16.msra.mxu0 %v187
    %221 = vmatprep.subr.bf16.mxu0 %v190
    %222 = vmatpush1.bf16.msra.mxu0 %v189
    %223 = vmatprep.subr.bf16.mxu0 %v192
    %224 = vmatpush1.bf16.msra.mxu0 %v191
    %225 = vmatprep.subr.bf16.mxu0 %v194
    %226 = vmatpush1.bf16.msra.mxu0 %v193
    %227 = vmatprep.subr.bf16.mxu0 %v196
    %228 = vmatpush1.bf16.msra.mxu0 %v195
    %229 = vmatprep.subr.bf16.mxu0 0
    %230 = vmatpush1.bf16.msra.mxu0 0
    %231 = vmatprep.subr.bf16.mxu0 0
    %232 = vmatpush1.bf16.msra.mxu0 0
    %233 = vmatprep.subr.bf16.mxu0 0
    %234 = vmatpush1.bf16.msra.mxu0 0
    %235 = vmatprep.subr.bf16.mxu0 0
    %236 = vmatpush1.bf16.msra.mxu0 0
    %237 = vmatprep.subr.bf16.mxu0 0
    %238 = vmatpush1.bf16.msra.mxu0 0
    %239 = vmatprep.subr.bf16.mxu0 0
    %240 = vmatpush1.bf16.msra.mxu0 0
    %241 = vmatprep.subr.bf16.mxu0 0
    %242 = vmatpush1.bf16.msra.mxu0 0
    %243 = vmatprep.subr.bf16.mxu0 0
    %244 = vmatpush1.bf16.msra.mxu0 0
    %245 = vmatprep.mubr.bf16.mxu0 0
    %246 = vmatmul.mubr.bf16.gmra.mrb[0].mxu0 %v104
    %v247 = vpop.f32.mrb[0].mxu0
    %v248 = vadd.f32 %v126, %v247
    %v249 = vpop.f32.mrb[0].mxu0
    %v250 = vadd.f32 %v130, %v249
    %v251 = vpop.f32.mrb[0].mxu0
    %v252 = vadd.f32 %v126, %v251
    %v253 = vpop.f32.mrb[0].mxu0
    %v254 = vadd.f32 %v130, %v253
    %255 = vdwg.mxu0
    %v256 = vmax.f32 %v248, 0.0
    %v257 = vmax.f32 %v250, 0.0
    %v258 = vmax.f32 %v252, 0.0
    %v259 = vmax.f32 %v254, 0.0
    %v260 = vpack.c.bf16 %v258, %v256
    %v261 = vpack.c.bf16 %v259, %v257
    %v262 = vld [vmem:[#allocation7] sm:$0xff]
    %v263 = vld [vmem:[#allocation7 + $0x8] sm:$0xff]
    %v264 = vld [vmem:[#allocation7 + $0x10] sm:$0xff]
    %v265 = vld [vmem:[#allocation7 + $0x18] sm:$0xff]
    %v266 = vld [vmem:[#allocation7 + $0x20] sm:$0xff]
    %v267 = vld [vmem:[#allocation7 + $0x28] sm:$0xff]
    %v268 = vld [vmem:[#allocation7 + $0x30] sm:$0xff]
    %v269 = vld [vmem:[#allocation7 + $0x38] sm:$0xff]
    %v270 = vld [vmem:[#allocation7 + $0x40] sm:$0xff]
    %v271 = vld [vmem:[#allocation7 + $0x48] sm:$0xff]
    %v272 = vld [vmem:[#allocation7 + $0x50] sm:$0xff]
    %v273 = vld [vmem:[#allocation7 + $0x58] sm:$0xff]
    %v274 = vld [vmem:[#allocation7 + $0x60] sm:$0xff]
    %v275 = vld [vmem:[#allocation7 + $0x68] sm:$0xff]
    %v276 = vld [vmem:[#allocation7 + $0x70] sm:$0xff]
    %v277 = vld [vmem:[#allocation7 + $0x78] sm:$0xff]
    %v278 = vld [vmem:[#allocation7 + $0x80] sm:$0xff]
    %v279 = vld [vmem:[#allocation7 + $0x88] sm:$0xff]
    %v280 = vld [vmem:[#allocation7 + $0x90] sm:$0xff]
    %v281 = vld [vmem:[#allocation7 + $0x98] sm:$0xff]
    %v282 = vld [vmem:[#allocation7 + $0xa0] sm:$0xff]
    %v283 = vld [vmem:[#allocation7 + $0xa8] sm:$0xff]
    %v284 = vld [vmem:[#allocation7 + $0xb0] sm:$0xff]
    %v285 = vld [vmem:[#allocation7 + $0xb8] sm:$0xff]
    %v286 = vld [vmem:[#allocation7 + $0xc0] sm:$0xff]
    %v287 = vld [vmem:[#allocation7 + $0xc8] sm:$0xff]
    %v288 = vld [vmem:[#allocation7 + $0xd0] sm:$0xff]
    %v289 = vld [vmem:[#allocation7 + $0xd8] sm:$0xff]
    %v290 = vld [vmem:[#allocation7 + $0xe0] sm:$0xff]
    %v291 = vld [vmem:[#allocation7 + $0xe8] sm:$0xff]
    %v292 = vld [vmem:[#allocation7 + $0xf0] sm:$0xff]
    %v293 = vld [vmem:[#allocation7 + $0xf8] sm:$0xff]
    %v294 = vld [vmem:[%s4] sm:$0x3]
    %v296 = vlaneseq
    %v297 = vshrl.u32 %v296, 7
    %v298 = vsub.s32 0, %v297
    %v299 = vrot.slane %v294, %v298
    %v300 = vlaneseq
    %v301 = vshrl.u32 %v300, 7
    %v302 = vsub.s32 1, %v301
    %v303 = vrot.slane %v294, %v302
    %v338 = vunpack.c.l.b16 %v262
    %v339 = vunpack.c.h.b16 %v262
    %v340 = vunpack.c.l.b16 %v263
    %v341 = vunpack.c.h.b16 %v263
    %v342 = vunpack.c.l.b16 %v264
    %v343 = vunpack.c.h.b16 %v264
    %v344 = vunpack.c.l.b16 %v265
    %v345 = vunpack.c.h.b16 %v265
    %v346 = vunpack.c.l.b16 %v266
    %v347 = vunpack.c.h.b16 %v266
    %v348 = vunpack.c.l.b16 %v267
    %v349 = vunpack.c.h.b16 %v267
    %v350 = vunpack.c.l.b16 %v268
    %v351 = vunpack.c.h.b16 %v268
    %v352 = vunpack.c.l.b16 %v269
    %v353 = vunpack.c.h.b16 %v269
    %v354 = vunpack.c.l.b16 %v270
    %v355 = vunpack.c.h.b16 %v270
    %v356 = vunpack.c.l.b16 %v271
    %v357 = vunpack.c.h.b16 %v271
    %v358 = vunpack.c.l.b16 %v272
    %v359 = vunpack.c.h.b16 %v272
    %v360 = vunpack.c.l.b16 %v273
    %v361 = vunpack.c.h.b16 %v273
    %v362 = vunpack.c.l.b16 %v274
    %v363 = vunpack.c.h.b16 %v274
    %v364 = vunpack.c.l.b16 %v275
    %v365 = vunpack.c.h.b16 %v275
    %v366 = vunpack.c.l.b16 %v276
    %v367 = vunpack.c.h.b16 %v276
    %v368 = vunpack.c.l.b16 %v277
    %v369 = vunpack.c.h.b16 %v277
    %v370 = vunpack.c.l.b16 %v278
    %v371 = vunpack.c.h.b16 %v278
    %v372 = vunpack.c.l.b16 %v279
    %v373 = vunpack.c.h.b16 %v279
    %v374 = vunpack.c.l.b16 %v280
    %v375 = vunpack.c.h.b16 %v280
    %v376 = vunpack.c.l.b16 %v281
    %v377 = vunpack.c.h.b16 %v281
    %v378 = vunpack.c.l.b16 %v282
    %v379 = vunpack.c.h.b16 %v282
    %v380 = vunpack.c.l.b16 %v283
    %v381 = vunpack.c.h.b16 %v283
    %v382 = vunpack.c.l.b16 %v284
    %v383 = vunpack.c.h.b16 %v284
    %v384 = vunpack.c.l.b16 %v285
    %v385 = vunpack.c.h.b16 %v285
    %v386 = vunpack.c.l.b16 %v286
    %v387 = vunpack.c.h.b16 %v286
    %v388 = vunpack.c.l.b16 %v287
    %v389 = vunpack.c.h.b16 %v287
    %v390 = vunpack.c.l.b16 %v288
    %v391 = vunpack.c.h.b16 %v288
    %v392 = vunpack.c.l.b16 %v289
    %v393 = vunpack.c.h.b16 %v289
    %v394 = vunpack.c.l.b16 %v290
    %v395 = vunpack.c.h.b16 %v290
    %v396 = vunpack.c.l.b16 %v291
    %v397 = vunpack.c.h.b16 %v291
    %v398 = vunpack.c.l.b16 %v292
    %v399 = vunpack.c.h.b16 %v292
    %v400 = vunpack.c.l.b16 %v293
    %v401 = vunpack.c.h.b16 %v293
    %v402 = vpack.c.b16 %v340, %v338
    %v403 = vpack.c.b16 %v341, %v339
    %v404 = vpack.c.b16 %v344, %v342
    %v405 = vpack.c.b16 %v345, %v343
    %v406 = vpack.c.b16 %v348, %v346
    %v407 = vpack.c.b16 %v349, %v347
    %v408 = vpack.c.b16 %v352, %v350
    %v409 = vpack.c.b16 %v353, %v351
    %v410 = vpack.c.b16 %v356, %v354
    %v411 = vpack.c.b16 %v357, %v355
    %v412 = vpack.c.b16 %v360, %v358
    %v413 = vpack.c.b16 %v361, %v359
    %v414 = vpack.c.b16 %v364, %v362
    %v415 = vpack.c.b16 %v365, %v363
    %v416 = vpack.c.b16 %v368, %v366
    %v417 = vpack.c.b16 %v369, %v367
    %v418 = vpack.c.b16 %v372, %v370
    %v419 = vpack.c.b16 %v373, %v371
    %v420 = vpack.c.b16 %v376, %v374
    %v421 = vpack.c.b16 %v377, %v375
    %v422 = vpack.c.b16 %v380, %v378
    %v423 = vpack.c.b16 %v381, %v379
    %v424 = vpack.c.b16 %v384, %v382
    %v425 = vpack.c.b16 %v385, %v383
    %v426 = vpack.c.b16 %v388, %v386
    %v427 = vpack.c.b16 %v389, %v387
    %v428 = vpack.c.b16 %v392, %v390
    %v429 = vpack.c.b16 %v393, %v391
    %v430 = vpack.c.b16 %v396, %v394
    %v431 = vpack.c.b16 %v397, %v395
    %v432 = vpack.c.b16 %v400, %v398
    %v433 = vpack.c.b16 %v401, %v399
    %466 = vmatprep.subr.bf16.mxu0 %v403
    %467 = vmatpush1.bf16.msra.mxu0 %v402
    %468 = vmatprep.subr.bf16.mxu0 %v405
    %469 = vmatpush1.bf16.msra.mxu0 %v404
    %470 = vmatprep.subr.bf16.mxu0 %v407
    %471 = vmatpush1.bf16.msra.mxu0 %v406
    %472 = vmatprep.subr.bf16.mxu0 %v409
    %473 = vmatpush1.bf16.msra.mxu0 %v408
    %474 = vmatprep.subr.bf16.mxu0 %v411
    %475 = vmatpush1.bf16.msra.mxu0 %v410
    %476 = vmatprep.subr.bf16.mxu0 %v413
    %477 = vmatpush1.bf16.msra.mxu0 %v412
    %478 = vmatprep.subr.bf16.mxu0 %v415
    %479 = vmatpush1.bf16.msra.mxu0 %v414
    %480 = vmatprep.subr.bf16.mxu0 %v417
    %481 = vmatpush1.bf16.msra.mxu0 %v416
    %482 = vmatprep.subr.bf16.mxu0 %v419
    %483 = vmatpush1.bf16.msra.mxu0 %v418
    %484 = vmatprep.subr.bf16.mxu0 %v421
    %485 = vmatpush1.bf16.msra.mxu0 %v420
    %486 = vmatprep.subr.bf16.mxu0 %v423
    %487 = vmatpush1.bf16.msra.mxu0 %v422
    %488 = vmatprep.subr.bf16.mxu0 %v425
    %489 = vmatpush1.bf16.msra.mxu0 %v424
    %490 = vmatprep.subr.bf16.mxu0 %v427
    %491 = vmatpush1.bf16.msra.mxu0 %v426
    %492 = vmatprep.subr.bf16.mxu0 %v429
    %493 = vmatpush1.bf16.msra.mxu0 %v428
    %494 = vmatprep.subr.bf16.mxu0 %v431
    %495 = vmatpush1.bf16.msra.mxu0 %v430
    %496 = vmatprep.subr.bf16.mxu0 %v433
    %497 = vmatpush1.bf16.msra.mxu0 %v432
    %498 = vmatprep.mubr.bf16.mxu0 %v261
    %499 = vmatmul.mubr.bf16.gmra.mrb[0].mxu0 %v260
    %v500 = vpop.f32.mrb[0].mxu0
    %v501 = vadd.f32 %v299, %v500
    %v502 = vpop.f32.mrb[0].mxu0
    %v503 = vadd.f32 %v303, %v502
    %v504 = vpop.f32.mrb[0].mxu0
    %v505 = vadd.f32 %v299, %v504
    %v506 = vpop.f32.mrb[0].mxu0
    %v507 = vadd.f32 %v303, %v506
    %508 = vdwg.mxu0
    %v509 = vmax.f32 %v501, 0.0
    %v510 = vmax.f32 %v503, 0.0
    %v511 = vmax.f32 %v505, 0.0
    %v512 = vmax.f32 %v507, 0.0
    %v513 = vpack.c.bf16 %v511, %v509
    %v514 = vpack.c.bf16 %v512, %v510
    %v515 = vld [vmem:[#allocation8] sm:$0xff]
    %v516 = vld [vmem:[#allocation8 + $0x8] sm:$0xf]
    %v517 = vld [vmem:[#allocation8 + $0xc] sm:$0xff]
    %v518 = vld [vmem:[#allocation8 + $0x14] sm:$0xf]
    %v519 = vld [vmem:[#allocation8 + $0x18] sm:$0xff]
    %v520 = vld [vmem:[#allocation8 + $0x20] sm:$0xf]
    %v521 = vld [vmem:[#allocation8 + $0x24] sm:$0xff]
    %v522 = vld [vmem:[#allocation8 + $0x2c] sm:$0xf]
    %v523 = vld [vmem:[#allocation8 + $0x30] sm:$0xff]
    %v524 = vld [vmem:[#allocation8 + $0x38] sm:$0xf]
    %v525 = vld [vmem:[#allocation8 + $0x3c] sm:$0xff]
    %v526 = vld [vmem:[#allocation8 + $0x44] sm:$0xf]
    %v527 = vld [vmem:[#allocation8 + $0x48] sm:$0xff]
    %v528 = vld [vmem:[#allocation8 + $0x50] sm:$0xf]
    %v529 = vld [vmem:[#allocation8 + $0x54] sm:$0xff]
    %v530 = vld [vmem:[#allocation8 + $0x5c] sm:$0xf]
    %v531 = vld [vmem:[#allocation8 + $0x60] sm:$0xff]
    %v532 = vld [vmem:[#allocation8 + $0x68] sm:$0xf]
    %v533 = vld [vmem:[#allocation8 + $0x6c] sm:$0xff]
    %v534 = vld [vmem:[#allocation8 + $0x74] sm:$0xf]
    %v535 = vld [vmem:[#allocation8 + $0x78] sm:$0xff]
    %v536 = vld [vmem:[#allocation8 + $0x80] sm:$0xf]
    %v537 = vld [vmem:[#allocation8 + $0x84] sm:$0xff]
    %v538 = vld [vmem:[#allocation8 + $0x8c] sm:$0xf]
    %v539 = vld [vmem:[#allocation8 + $0x90] sm:$0xff]
    %v540 = vld [vmem:[#allocation8 + $0x98] sm:$0xf]
    %v541 = vld [vmem:[#allocation8 + $0x9c] sm:$0xff]
    %v542 = vld [vmem:[#allocation8 + $0xa4] sm:$0xf]
    %v543 = vld [vmem:[#allocation8 + $0xa8] sm:$0xff]
    %v544 = vld [vmem:[#allocation8 + $0xb0] sm:$0xf]
    %v545 = vld [vmem:[#allocation8 + $0xb4] sm:$0xff]
    %v546 = vld [vmem:[#allocation8 + $0xbc] sm:$0xf]
    %v547 = vld [vmem:[#allocation8 + $0xc0] sm:$0xff]
    %v548 = vld [vmem:[#allocation8 + $0xc8] sm:$0xf]
    %v549 = vld [vmem:[#allocation8 + $0xcc] sm:$0xff]
    %v550 = vld [vmem:[#allocation8 + $0xd4] sm:$0xf]
    %v551 = vld [vmem:[#allocation8 + $0xd8] sm:$0xff]
    %v552 = vld [vmem:[#allocation8 + $0xe0] sm:$0xf]
    %v553 = vld [vmem:[#allocation8 + $0xe4] sm:$0xff]
    %v554 = vld [vmem:[#allocation8 + $0xec] sm:$0xf]
    %v555 = vld [vmem:[#allocation8 + $0xf0] sm:$0xff]
    %v556 = vld [vmem:[#allocation8 + $0xf8] sm:$0xf]
    %v557 = vld [vmem:[#allocation8 + $0xfc] sm:$0xff]
    %v558 = vld [vmem:[#allocation8 + $0x104] sm:$0xf]
    %v559 = vld [vmem:[#allocation8 + $0x108] sm:$0xff]
    %v560 = vld [vmem:[#allocation8 + $0x110] sm:$0xf]
    %v561 = vld [vmem:[#allocation8 + $0x114] sm:$0xff]
    %v562 = vld [vmem:[#allocation8 + $0x11c] sm:$0xf]
    %v563 = vld [vmem:[#allocation8 + $0x120] sm:$0xff]
    %v564 = vld [vmem:[#allocation8 + $0x128] sm:$0xf]
    %v565 = vld [vmem:[#allocation8 + $0x12c] sm:$0xff]
    %v566 = vld [vmem:[#allocation8 + $0x134] sm:$0xf]
    %v567 = vld [vmem:[#allocation8 + $0x138] sm:$0xff]
    %v568 = vld [vmem:[#allocation8 + $0x140] sm:$0xf]
    %v569 = vld [vmem:[#allocation8 + $0x144] sm:$0xff]
    %v570 = vld [vmem:[#allocation8 + $0x14c] sm:$0xf]
    %v571 = vld [vmem:[#allocation8 + $0x150] sm:$0xff]
    %v572 = vld [vmem:[#allocation8 + $0x158] sm:$0xf]
    %v573 = vld [vmem:[#allocation8 + $0x15c] sm:$0xff]
    %v574 = vld [vmem:[#allocation8 + $0x164] sm:$0xf]
    %v575 = vld [vmem:[#allocation8 + $0x168] sm:$0xff]
    %v576 = vld [vmem:[#allocation8 + $0x170] sm:$0xf]
    %v577 = vld [vmem:[#allocation8 + $0x174] sm:$0xff]
    %v578 = vld [vmem:[#allocation8 + $0x17c] sm:$0xf]
    %v579 = vld [vmem:[%s6] sm:$0x7]
    %v581 = vlaneseq
    %v582 = vshrl.u32 %v581, 7
    %v583 = vsub.s32 0, %v582
    %v584 = vrot.slane %v579, %v583
    %v585 = vlaneseq
    %v586 = vshrl.u32 %v585, 7
    %v587 = vsub.s32 1, %v586
    %v588 = vrot.slane %v579, %v587
    %v589 = vlaneseq
    %v590 = vshrl.u32 %v589, 7
    %v591 = vsub.s32 2, %v590
    %v592 = vrot.slane %v579, %v591
    %v660 = vunpack.c.l.b16 %v515
    %v661 = vunpack.c.h.b16 %v515
    %v662 = vunpack.c.l.b16 %v516
    %v663 = vunpack.c.l.b16 %v517
    %v664 = vunpack.c.h.b16 %v517
    %v665 = vunpack.c.l.b16 %v518
    %v666 = vunpack.c.l.b16 %v519
    %v667 = vunpack.c.h.b16 %v519
    %v668 = vunpack.c.l.b16 %v520
    %v669 = vunpack.c.l.b16 %v521
    %v670 = vunpack.c.h.b16 %v521
    %v671 = vunpack.c.l.b16 %v522
    %v672 = vunpack.c.l.b16 %v523
    %v673 = vunpack.c.h.b16 %v523
    %v674 = vunpack.c.l.b16 %v524
    %v675 = vunpack.c.l.b16 %v525
    %v676 = vunpack.c.h.b16 %v525
    %v677 = vunpack.c.l.b16 %v526
    %v678 = vunpack.c.l.b16 %v527
    %v679 = vunpack.c.h.b16 %v527
    %v680 = vunpack.c.l.b16 %v528
    %v681 = vunpack.c.l.b16 %v529
    %v682 = vunpack.c.h.b16 %v529
    %v683 = vunpack.c.l.b16 %v530
    %v684 = vunpack.c.l.b16 %v531
    %v685 = vunpack.c.h.b16 %v531
    %v686 = vunpack.c.l.b16 %v532
    %v687 = vunpack.c.l.b16 %v533
    %v688 = vunpack.c.h.b16 %v533
    %v689 = vunpack.c.l.b16 %v534
    %v690 = vunpack.c.l.b16 %v535
    %v691 = vunpack.c.h.b16 %v535
    %v692 = vunpack.c.l.b16 %v536
    %v693 = vunpack.c.l.b16 %v537
    %v694 = vunpack.c.h.b16 %v537
    %v695 = vunpack.c.l.b16 %v538
    %v696 = vunpack.c.l.b16 %v539
    %v697 = vunpack.c.h.b16 %v539
    %v698 = vunpack.c.l.b16 %v540
    %v699 = vunpack.c.l.b16 %v541
    %v700 = vunpack.c.h.b16 %v541
    %v701 = vunpack.c.l.b16 %v542
    %v702 = vunpack.c.l.b16 %v543
    %v703 = vunpack.c.h.b16 %v543
    %v704 = vunpack.c.l.b16 %v544
    %v705 = vunpack.c.l.b16 %v545
    %v706 = vunpack.c.h.b16 %v545
    %v707 = vunpack.c.l.b16 %v546
    %v708 = vunpack.c.l.b16 %v547
    %v709 = vunpack.c.h.b16 %v547
    %v710 = vunpack.c.l.b16 %v548
    %v711 = vunpack.c.l.b16 %v549
    %v712 = vunpack.c.h.b16 %v549
    %v713 = vunpack.c.l.b16 %v550
    %v714 = vunpack.c.l.b16 %v551
    %v715 = vunpack.c.h.b16 %v551
    %v716 = vunpack.c.l.b16 %v552
    %v717 = vunpack.c.l.b16 %v553
    %v718 = vunpack.c.h.b16 %v553
    %v719 = vunpack.c.l.b16 %v554
    %v720 = vunpack.c.l.b16 %v555
    %v721 = vunpack.c.h.b16 %v555
    %v722 = vunpack.c.l.b16 %v556
    %v723 = vunpack.c.l.b16 %v557
    %v724 = vunpack.c.h.b16 %v557
    %v725 = vunpack.c.l.b16 %v558
    %v726 = vunpack.c.l.b16 %v559
    %v727 = vunpack.c.h.b16 %v559
    %v728 = vunpack.c.l.b16 %v560
    %v729 = vunpack.c.l.b16 %v561
    %v730 = vunpack.c.h.b16 %v561
    %v731 = vunpack.c.l.b16 %v562
    %v732 = vunpack.c.l.b16 %v563
    %v733 = vunpack.c.h.b16 %v563
    %v734 = vunpack.c.l.b16 %v564
    %v735 = vunpack.c.l.b16 %v565
    %v736 = vunpack.c.h.b16 %v565
    %v737 = vunpack.c.l.b16 %v566
    %v738 = vunpack.c.l.b16 %v567
    %v739 = vunpack.c.h.b16 %v567
    %v740 = vunpack.c.l.b16 %v568
    %v741 = vunpack.c.l.b16 %v569
    %v742 = vunpack.c.h.b16 %v569
    %v743 = vunpack.c.l.b16 %v570
    %v744 = vunpack.c.l.b16 %v571
    %v745 = vunpack.c.h.b16 %v571
    %v746 = vunpack.c.l.b16 %v572
    %v747 = vunpack.c.l.b16 %v573
    %v748 = vunpack.c.h.b16 %v573
    %v749 = vunpack.c.l.b16 %v574
    %v750 = vunpack.c.l.b16 %v575
    %v751 = vunpack.c.h.b16 %v575
    %v752 = vunpack.c.l.b16 %v576
    %v753 = vunpack.c.l.b16 %v577
    %v754 = vunpack.c.h.b16 %v577
    %v755 = vunpack.c.l.b16 %v578
    %v756 = vpack.c.b16 %v663, %v660
    %v757 = vpack.c.b16 %v664, %v661
    %v758 = vpack.c.b16 %v665, %v662
    %v759 = vpack.c.b16 %v669, %v666
    %v760 = vpack.c.b16 %v670, %v667
    %v761 = vpack.c.b16 %v671, %v668
    %v762 = vpack.c.b16 %v675, %v672
    %v763 = vpack.c.b16 %v676, %v673
    %v764 = vpack.c.b16 %v677, %v674
    %v765 = vpack.c.b16 %v681, %v678
    %v766 = vpack.c.b16 %v682, %v679
    %v767 = vpack.c.b16 %v683, %v680
    %v768 = vpack.c.b16 %v687, %v684
    %v769 = vpack.c.b16 %v688, %v685
    %v770 = vpack.c.b16 %v689, %v686
    %v771 = vpack.c.b16 %v693, %v690
    %v772 = vpack.c.b16 %v694, %v691
    %v773 = vpack.c.b16 %v695, %v692
    %v774 = vpack.c.b16 %v699, %v696
    %v775 = vpack.c.b16 %v700, %v697
    %v776 = vpack.c.b16 %v701, %v698
    %v777 = vpack.c.b16 %v705, %v702
    %v778 = vpack.c.b16 %v706, %v703
    %v779 = vpack.c.b16 %v707, %v704
    %v780 = vpack.c.b16 %v711, %v708
    %v781 = vpack.c.b16 %v712, %v709
    %v782 = vpack.c.b16 %v713, %v710
    %v783 = vpack.c.b16 %v717, %v714
    %v784 = vpack.c.b16 %v718, %v715
    %v785 = vpack.c.b16 %v719, %v716
    %v786 = vpack.c.b16 %v723, %v720
    %v787 = vpack.c.b16 %v724, %v721
    %v788 = vpack.c.b16 %v725, %v722
    %v789 = vpack.c.b16 %v729, %v726
    %v790 = vpack.c.b16 %v730, %v727
    %v791 = vpack.c.b16 %v731, %v728
    %v792 = vpack.c.b16 %v735, %v732
    %v793 = vpack.c.b16 %v736, %v733
    %v794 = vpack.c.b16 %v737, %v734
    %v795 = vpack.c.b16 %v741, %v738
    %v796 = vpack.c.b16 %v742, %v739
    %v797 = vpack.c.b16 %v743, %v740
    %v798 = vpack.c.b16 %v747, %v744
    %v799 = vpack.c.b16 %v748, %v745
    %v800 = vpack.c.b16 %v749, %v746
    %v801 = vpack.c.b16 %v753, %v750
    %v802 = vpack.c.b16 %v754, %v751
    %v803 = vpack.c.b16 %v755, %v752
    %852 = vmatprep.subr.bf16.mxu0 %v757
    %853 = vmatpush1.bf16.msra.mxu0 %v756
    %854 = vmatprep.subr.bf16.mxu0 %v760
    %855 = vmatpush1.bf16.msra.mxu0 %v759
    %856 = vmatprep.subr.bf16.mxu0 %v763
    %857 = vmatpush1.bf16.msra.mxu0 %v762
    %858 = vmatprep.subr.bf16.mxu0 %v766
    %859 = vmatpush1.bf16.msra.mxu0 %v765
    %860 = vmatprep.subr.bf16.mxu0 %v769
    %861 = vmatpush1.bf16.msra.mxu0 %v768
    %862 = vmatprep.subr.bf16.mxu0 %v772
    %863 = vmatpush1.bf16.msra.mxu0 %v771
    %864 = vmatprep.subr.bf16.mxu0 %v775
    %865 = vmatpush1.bf16.msra.mxu0 %v774
    %866 = vmatprep.subr.bf16.mxu0 %v778
    %867 = vmatpush1.bf16.msra.mxu0 %v777
    %868 = vmatprep.subr.bf16.mxu0 %v781
    %869 = vmatpush1.bf16.msra.mxu0 %v780
    %870 = vmatprep.subr.bf16.mxu0 %v784
    %871 = vmatpush1.bf16.msra.mxu0 %v783
    %872 = vmatprep.subr.bf16.mxu0 %v787
    %873 = vmatpush1.bf16.msra.mxu0 %v786
    %874 = vmatprep.subr.bf16.mxu0 %v790
    %875 = vmatpush1.bf16.msra.mxu0 %v789
    %876 = vmatprep.subr.bf16.mxu0 %v793
    %877 = vmatpush1.bf16.msra.mxu0 %v792
    %878 = vmatprep.subr.bf16.mxu0 %v796
    %879 = vmatpush1.bf16.msra.mxu0 %v795
    %880 = vmatprep.subr.bf16.mxu0 %v799
    %881 = vmatpush1.bf16.msra.mxu0 %v798
    %882 = vmatprep.subr.bf16.mxu0 %v802
    %883 = vmatpush1.bf16.msra.mxu0 %v801
    %884 = vmatprep.mubr.bf16.mxu0 %v514
    %885 = vmatmul.mubr.bf16.gmra.mrb[0].mxu0 %v513
    %v886 = vpop.f32.mrb[0].mxu0
    %v887 = vadd.f32 %v584, %v886
    %v888 = vpop.f32.mrb[0].mxu0
    %v889 = vadd.f32 %v588, %v888
    %v890 = vpop.f32.mrb[0].mxu0
    %v891 = vadd.f32 %v584, %v890
    %v892 = vpop.f32.mrb[0].mxu0
    %v893 = vadd.f32 %v588, %v892
    %894 = vdwg.mxu0
    %895 = vmatprep.subr.bf16.mxu0 0
    %896 = vmatpush1.bf16.msra.mxu0 %v758
    %897 = vmatprep.subr.bf16.mxu0 0
    %898 = vmatpush1.bf16.msra.mxu0 %v761
    %899 = vmatprep.subr.bf16.mxu0 0
    %900 = vmatpush1.bf16.msra.mxu0 %v764
    %901 = vmatprep.subr.bf16.mxu0 0
    %902 = vmatpush1.bf16.msra.mxu0 %v767
    %903 = vmatprep.subr.bf16.mxu0 0
    %904 = vmatpush1.bf16.msra.mxu0 %v770
    %905 = vmatprep.subr.bf16.mxu0 0
    %906 = vmatpush1.bf16.msra.mxu0 %v773
    %907 = vmatprep.subr.bf16.mxu0 0
    %908 = vmatpush1.bf16.msra.mxu0 %v776
    %909 = vmatprep.subr.bf16.mxu0 0
    %910 = vmatpush1.bf16.msra.mxu0 %v779
    %911 = vmatprep.subr.bf16.mxu0 0
    %912 = vmatpush1.bf16.msra.mxu0 %v782
    %913 = vmatprep.subr.bf16.mxu0 0
    %914 = vmatpush1.bf16.msra.mxu0 %v785
    %915 = vmatprep.subr.bf16.mxu0 0
    %916 = vmatpush1.bf16.msra.mxu0 %v788
    %917 = vmatprep.subr.bf16.mxu0 0
    %918 = vmatpush1.bf16.msra.mxu0 %v791
    %919 = vmatprep.subr.bf16.mxu0 0
    %920 = vmatpush1.bf16.msra.mxu0 %v794
    %921 = vmatprep.subr.bf16.mxu0 0
    %922 = vmatpush1.bf16.msra.mxu0 %v797
    %923 = vmatprep.subr.bf16.mxu0 0
    %924 = vmatpush1.bf16.msra.mxu0 %v800
    %925 = vmatprep.subr.bf16.mxu0 0
    %926 = vmatpush1.bf16.msra.mxu0 %v803
    %927 = vmatprep.mubr.bf16.mxu0 %v514
    %928 = vmatmul.mubr.bf16.gmra.mrb[0].mxu0 %v513
    %v929 = vpop.f32.mrb[0].mxu0
    %v930 = vadd.f32 %v592, %v929
    %v931 = vpop.f32.mrb[0].mxu0
    %v932 = vpop.f32.mrb[0].mxu0
    %v933 = vadd.f32 %v592, %v932
    %v934 = vpop.f32.mrb[0].mxu0
    %935 = vdwg.mxu0
    %v936 = vmax.f32 %v887, 0.0
    %v937 = vmax.f32 %v889, 0.0
    %v938 = vmax.f32 %v930, 0.0
    %v939 = vmax.f32 %v891, 0.0
    %v940 = vmax.f32 %v893, 0.0
    %v941 = vmax.f32 %v933, 0.0
    %v942 = vpack.c.bf16 %v939, %v936
    %v943 = vpack.c.bf16 %v940, %v937
    %v944 = vpack.c.bf16 %v941, %v938
    %v945 = vld [vmem:[#allocation10] sm:$0xf]
    %v946 = vld [vmem:[#allocation10 + $0x4] sm:$0xf]
    %v947 = vld [vmem:[#allocation10 + $0x8] sm:$0xf]
    %v948 = vld [vmem:[#allocation10 + $0xc] sm:$0xf]
    %v949 = vld [vmem:[#allocation10 + $0x10] sm:$0xf]
    %v950 = vld [vmem:[#allocation10 + $0x14] sm:$0xf]
    %v951 = vld [vmem:[#allocation10 + $0x18] sm:$0xf]
    %v952 = vld [vmem:[#allocation10 + $0x1c] sm:$0xf]
    %v953 = vld [vmem:[#allocation10 + $0x20] sm:$0xf]
    %v954 = vld [vmem:[#allocation10 + $0x24] sm:$0xf]
    %v955 = vld [vmem:[#allocation10 + $0x28] sm:$0xf]
    %v956 = vld [vmem:[#allocation10 + $0x2c] sm:$0xf]
    %v957 = vld [vmem:[#allocation10 + $0x30] sm:$0xf]
    %v958 = vld [vmem:[#allocation10 + $0x34] sm:$0xf]
    %v959 = vld [vmem:[#allocation10 + $0x38] sm:$0xf]
    %v960 = vld [vmem:[#allocation10 + $0x3c] sm:$0xf]
    %v961 = vld [vmem:[#allocation10 + $0x40] sm:$0xf]
    %v962 = vld [vmem:[#allocation10 + $0x44] sm:$0xf]
    %v963 = vld [vmem:[#allocation10 + $0x48] sm:$0xf]
    %v964 = vld [vmem:[#allocation10 + $0x4c] sm:$0xf]
    %v965 = vld [vmem:[#allocation10 + $0x50] sm:$0xf]
    %v966 = vld [vmem:[#allocation10 + $0x54] sm:$0xf]
    %v967 = vld [vmem:[#allocation10 + $0x58] sm:$0xf]
    %v968 = vld [vmem:[#allocation10 + $0x5c] sm:$0xf]
    %v969 = vld [vmem:[#allocation10 + $0x60] sm:$0xf]
    %v970 = vld [vmem:[#allocation10 + $0x64] sm:$0xf]
    %v971 = vld [vmem:[#allocation10 + $0x68] sm:$0xf]
    %v972 = vld [vmem:[#allocation10 + $0x6c] sm:$0xf]
    %v973 = vld [vmem:[#allocation10 + $0x70] sm:$0xf]
    %v974 = vld [vmem:[#allocation10 + $0x74] sm:$0xf]
    %v975 = vld [vmem:[#allocation10 + $0x78] sm:$0xf]
    %v976 = vld [vmem:[#allocation10 + $0x7c] sm:$0xf]
    %v977 = vld [vmem:[#allocation10 + $0x80] sm:$0xf]
    %v978 = vld [vmem:[#allocation10 + $0x84] sm:$0xf]
    %v979 = vld [vmem:[#allocation10 + $0x88] sm:$0xf]
    %v980 = vld [vmem:[#allocation10 + $0x8c] sm:$0xf]
    %v981 = vld [vmem:[#allocation10 + $0x90] sm:$0xf]
    %v982 = vld [vmem:[#allocation10 + $0x94] sm:$0xf]
    %v983 = vld [vmem:[#allocation10 + $0x98] sm:$0xf]
    %v984 = vld [vmem:[#allocation10 + $0x9c] sm:$0xf]
    %v985 = vld [vmem:[#allocation10 + $0xa0] sm:$0xf]
    %v986 = vld [vmem:[#allocation10 + $0xa4] sm:$0xf]
    %v987 = vld [vmem:[#allocation10 + $0xa8] sm:$0xf]
    %v988 = vld [vmem:[#allocation10 + $0xac] sm:$0xf]
    %v989 = vld [vmem:[#allocation10 + $0xb0] sm:$0xf]
    %v990 = vld [vmem:[#allocation10 + $0xb4] sm:$0xf]
    %v991 = vld [vmem:[#allocation10 + $0xb8] sm:$0xf]
    %v992 = vld [vmem:[#allocation10 + $0xbc] sm:$0xf]
    %v993 = vld [vmem:[%s8] sm:$0x1]
    %v995 = vlaneseq
    %v996 = vshrl.u32 %v995, 7
    %v997 = vsub.s32 0, %v996
    %v998 = vrot.slane %v993, %v997
    %v1048 = vunpack.c.l.b16 %v945
    %v1049 = vunpack.c.l.b16 %v946
    %v1050 = vunpack.c.l.b16 %v947
    %v1051 = vunpack.c.l.b16 %v948
    %v1052 = vunpack.c.l.b16 %v949
    %v1053 = vunpack.c.l.b16 %v950
    %v1054 = vunpack.c.l.b16 %v951
    %v1055 = vunpack.c.l.b16 %v952
    %v1056 = vunpack.c.l.b16 %v953
    %v1057 = vunpack.c.l.b16 %v954
    %v1058 = vunpack.c.l.b16 %v955
    %v1059 = vunpack.c.l.b16 %v956
    %v1060 = vunpack.c.l.b16 %v957
    %v1061 = vunpack.c.l.b16 %v958
    %v1062 = vunpack.c.l.b16 %v959
    %v1063 = vunpack.c.l.b16 %v960
    %v1064 = vunpack.c.l.b16 %v961
    %v1065 = vunpack.c.l.b16 %v962
    %v1066 = vunpack.c.l.b16 %v963
    %v1067 = vunpack.c.l.b16 %v964
    %v1068 = vunpack.c.l.b16 %v965
    %v1069 = vunpack.c.l.b16 %v966
    %v1070 = vunpack.c.l.b16 %v967
    %v1071 = vunpack.c.l.b16 %v968
    %v1072 = vunpack.c.l.b16 %v969
    %v1073 = vunpack.c.l.b16 %v970
    %v1074 = vunpack.c.l.b16 %v971
    %v1075 = vunpack.c.l.b16 %v972
    %v1076 = vunpack.c.l.b16 %v973
    %v1077 = vunpack.c.l.b16 %v974
    %v1078 = vunpack.c.l.b16 %v975
    %v1079 = vunpack.c.l.b16 %v976
    %v1080 = vunpack.c.l.b16 %v977
    %v1081 = vunpack.c.l.b16 %v978
    %v1082 = vunpack.c.l.b16 %v979
    %v1083 = vunpack.c.l.b16 %v980
    %v1084 = vunpack.c.l.b16 %v981
    %v1085 = vunpack.c.l.b16 %v982
    %v1086 = vunpack.c.l.b16 %v983
    %v1087 = vunpack.c.l.b16 %v984
    %v1088 = vunpack.c.l.b16 %v985
    %v1089 = vunpack.c.l.b16 %v986
    %v1090 = vunpack.c.l.b16 %v987
    %v1091 = vunpack.c.l.b16 %v988
    %v1092 = vunpack.c.l.b16 %v989
    %v1093 = vunpack.c.l.b16 %v990
    %v1094 = vunpack.c.l.b16 %v991
    %v1095 = vunpack.c.l.b16 %v992
    %v1096 = vpack.c.b16 %v1049, %v1048
    %v1097 = vpack.c.b16 %v1051, %v1050
    %v1098 = vpack.c.b16 %v1053, %v1052
    %v1099 = vpack.c.b16 %v1055, %v1054
    %v1100 = vpack.c.b16 %v1057, %v1056
    %v1101 = vpack.c.b16 %v1059, %v1058
    %v1102 = vpack.c.b16 %v1061, %v1060
    %v1103 = vpack.c.b16 %v1063, %v1062
    %v1104 = vpack.c.b16 %v1065, %v1064
    %v1105 = vpack.c.b16 %v1067, %v1066
    %v1106 = vpack.c.b16 %v1069, %v1068
    %v1107 = vpack.c.b16 %v1071, %v1070
    %v1108 = vpack.c.b16 %v1073, %v1072
    %v1109 = vpack.c.b16 %v1075, %v1074
    %v1110 = vpack.c.b16 %v1077, %v1076
    %v1111 = vpack.c.b16 %v1079, %v1078
    %v1112 = vpack.c.b16 %v1081, %v1080
    %v1113 = vpack.c.b16 %v1083, %v1082
    %v1114 = vpack.c.b16 %v1085, %v1084
    %v1115 = vpack.c.b16 %v1087, %v1086
    %v1116 = vpack.c.b16 %v1089, %v1088
    %v1117 = vpack.c.b16 %v1091, %v1090
    %v1118 = vpack.c.b16 %v1093, %v1092
    %v1119 = vpack.c.b16 %v1095, %v1094
    %1144 = vmatprep.subr.bf16.mxu0 0
    %1145 = vmatpush1.bf16.msra.mxu0 %v1096
    %1146 = vmatprep.subr.bf16.mxu0 0
    %1147 = vmatpush1.bf16.msra.mxu0 %v1097
    %1148 = vmatprep.subr.bf16.mxu0 0
    %1149 = vmatpush1.bf16.msra.mxu0 %v1098
    %1150 = vmatprep.subr.bf16.mxu0 0
    %1151 = vmatpush1.bf16.msra.mxu0 %v1099
    %1152 = vmatprep.subr.bf16.mxu0 0
    %1153 = vmatpush1.bf16.msra.mxu0 %v1100
    %1154 = vmatprep.subr.bf16.mxu0 0
    %1155 = vmatpush1.bf16.msra.mxu0 %v1101
    %1156 = vmatprep.subr.bf16.mxu0 0
    %1157 = vmatpush1.bf16.msra.mxu0 %v1102
    %1158 = vmatprep.subr.bf16.mxu0 0
    %1159 = vmatpush1.bf16.msra.mxu0 %v1103
    %1160 = vmatprep.subr.bf16.mxu0 0
    %1161 = vmatpush1.bf16.msra.mxu0 %v1104
    %1162 = vmatprep.subr.bf16.mxu0 0
    %1163 = vmatpush1.bf16.msra.mxu0 %v1105
    %1164 = vmatprep.subr.bf16.mxu0 0
    %1165 = vmatpush1.bf16.msra.mxu0 %v1106
    %1166 = vmatprep.subr.bf16.mxu0 0
    %1167 = vmatpush1.bf16.msra.mxu0 %v1107
    %1168 = vmatprep.subr.bf16.mxu0 0
    %1169 = vmatpush1.bf16.msra.mxu0 %v1108
    %1170 = vmatprep.subr.bf16.mxu0 0
    %1171 = vmatpush1.bf16.msra.mxu0 %v1109
    %1172 = vmatprep.subr.bf16.mxu0 0
    %1173 = vmatpush1.bf16.msra.mxu0 %v1110
    %1174 = vmatprep.subr.bf16.mxu0 0
    %1175 = vmatpush1.bf16.msra.mxu0 %v1111
    %1176 = vmatprep.mubr.bf16.mxu0 %v943
    %1177 = vmatmul.mubr.bf16.gmra.mrb[0].mxu0 %v942
    %v1178 = vpop.f32.mrb[0].mxu0
    %v1179 = vadd.f32 %v998, %v1178
    %v1180 = vpop.f32.mrb[0].mxu0
    %v1181 = vpop.f32.mrb[0].mxu0
    %v1182 = vadd.f32 %v998, %v1181
    %v1183 = vpop.f32.mrb[0].mxu0
    %1184 = vdwg.mxu0
    %1185 = vmatprep.subr.bf16.mxu0 0
    %1186 = vmatpush1.bf16.msra.mxu0 %v1112
    %1187 = vmatprep.subr.bf16.mxu0 0
    %1188 = vmatpush1.bf16.msra.mxu0 %v1113
    %1189 = vmatprep.subr.bf16.mxu0 0
    %1190 = vmatpush1.bf16.msra.mxu0 %v1114
    %1191 = vmatprep.subr.bf16.mxu0 0
    %1192 = vmatpush1.bf16.msra.mxu0 %v1115
    %1193 = vmatprep.subr.bf16.mxu0 0
    %1194 = vmatpush1.bf16.msra.mxu0 %v1116
    %1195 = vmatprep.subr.bf16.mxu0 0
    %1196 = vmatpush1.bf16.msra.mxu0 %v1117
    %1197 = vmatprep.subr.bf16.mxu0 0
    %1198 = vmatpush1.bf16.msra.mxu0 %v1118
    %1199 = vmatprep.subr.bf16.mxu0 0
    %1200 = vmatpush1.bf16.msra.mxu0 %v1119
    %1201 = vmatprep.subr.bf16.mxu0 0
    %1202 = vmatpush1.bf16.msra.mxu0 0
    %1203 = vmatprep.subr.bf16.mxu0 0
    %1204 = vmatpush1.bf16.msra.mxu0 0
    %1205 = vmatprep.subr.bf16.mxu0 0
    %1206 = vmatpush1.bf16.msra.mxu0 0
    %1207 = vmatprep.subr.bf16.mxu0 0
    %1208 = vmatpush1.bf16.msra.mxu0 0
    %1209 = vmatprep.subr.bf16.mxu0 0
    %1210 = vmatpush1.bf16.msra.mxu0 0
    %1211 = vmatprep.subr.bf16.mxu0 0
    %1212 = vmatpush1.bf16.msra.mxu0 0
    %1213 = vmatprep.subr.bf16.mxu0 0
    %1214 = vmatpush1.bf16.msra.mxu0 0
    %1215 = vmatprep.subr.bf16.mxu0 0
    %1216 = vmatpush1.bf16.msra.mxu0 0
    %1217 = vmatprep.mubr.bf16.mxu0 0
    %1218 = vmatmul.mubr.bf16.gmra.mrb[0].mxu0 %v944
    %v1219 = vpop.f32.mrb[0].mxu0
    %v1220 = vadd.f32 %v1179, %v1219
    %v1221 = vpop.f32.mrb[0].mxu0
    %v1222 = vpop.f32.mrb[0].mxu0
    %v1223 = vadd.f32 %v1182, %v1222
    %v1224 = vpop.f32.mrb[0].mxu0
    %1225 = vdwg.mxu0
    %v1226 = vlaneseq
    %v1227 = vand.u32 %v1226, 127
    %vm1228 = vcmp.ge.s32.totalorder %v1227, 10
    %vm1229 = vcmp.lt.s32.totalorder %v1227, 19
    %vm1230 = vmand %vm1228, %vm1229
    %v1231 = vxor.u32 %v1220, 2147483648
    %v1232 = vxor.u32 %v1223, 2147483648
    %v1233 = vmul.f32 %v1231, 1.442695
    %v1234 = vpow.pop %v1233
    %v1235 = vmul.f32 %v1232, 1.442695
    %v1236 = vpow.pop %v1235
    %v1237 = vadd.f32 %v1234, 1.0
    %v1238 = vadd.f32 %v1236, 1.0
    %v1239 = vrcp.pop %v1237
    %v1240 = vmul.f32 1.0, %v1239
    %v1241 = vrcp.pop %v1238
    %v1242 = vmul.f32 1.0, %v1241
    %v1243 = vsel %vm1230, %v1240, %v1220
    %v1244 = vsel %vm1230, %v1242, %v1223
    %1245 = vst [vmem:[#allocation11] sm:$0xff] %v1243
    %1246 = vst [vmem:[#allocation11 + $0x8] sm:$0xff] %v1244
    // Predicated region
    $region58: #{tpu_custom_call.1} parent=1 // pred_check
      _
    $region59: #{tpu_custom_call.1} parent=1 // pred_check_branch
      %1248 = sbr.rel (0) target = $region61
    $region60: #{tpu_custom_call.1} parent=1 // pred_region
      %s1250 = ssub.s32 256, 256
      %1251 = vsyncadd [#allocation4], %s1250
      %s1252 = sshll.u32 [#allocation11], 4
      %s1253 = int_to_ptr.vmem [resolvable:$true] %s1252
      %1258 = dma.vmem_to_hbm [thread:$0]  %s1253, 256, %s9, [#allocation4], 128, 128, 8
    $region61: #{tpu_custom_call.1} parent=1 // pred_fallthru
      _
    // Predicated region
    $region62: #{tpu_custom_call.1} parent=1 // pred_check
      _
    $region63: #{tpu_custom_call.1} parent=1 // pred_check_branch
      %1260 = sbr.rel (0) target = $region65
    $region64: #{tpu_custom_call.1} parent=1 // pred_region
      %1261 = dma.done [#allocation4], 256
    $region65: #{tpu_custom_call.1} parent=1 // pred_fallthru
      _
    %1262 = vsyncpa [#allocation3], 1
    %1263 = vsyncpa [#allocation6], 1
    %1264 = vsyncpa [#allocation9], 1
    %1265 = vsyncpa [#allocation4], 1

</llo_original>
